<compile_context>
chip_gen: v6e
topology: v6e:2x2x1
jax: 0.10.0
libtpu: 0.0.40
codegen_flags: <defaults>
</compile_context>

<pallas_src>
import jax
import jax.numpy as jnp
from jax.experimental import pallas as pl
from jax.experimental.pallas import tpu as pltpu

_LANES = 128
_TARGET_TILE_ROWS = 4096          # 4096 x 128 x f32 = 2 MiB per block


# ----------------------------------------------------------------------- helpers
def _round_up(x, m):
    return ((x + m - 1) // m) * m


def _pick_tile(rows8, target):
    """Largest row-tile <= target (multiple of 8) that divides rows8 if possible."""
    target = min(max(8, (target // 8) * 8), rows8)
    if rows8 <= target:
        return rows8
    floor = max(8, target // 8)
    t = target
    while t >= floor:
        if rows8 % t == 0:
            return t                      # no padding needed
        t -= 8
    return target                         # accept padding up to one tile


def _plan(a, max_tile_rows=None):
    """Lane-dense 2D plan (C, rows, rows_padded, tile_rows) for a flattened view."""
    H = a.shape[-1]
    C = _LANES if _LANES % H == 0 else H   # head = lane % H when H | 128
    rows = -(-a.size // C)
    rows8 = _round_up(rows, 8)
    tile = _pick_tile(rows8, max_tile_rows or _TARGET_TILE_ROWS)
    rows_p = _round_up(rows8, tile)
    return C, rows, rows_p, tile


def _to_2d(a, C, rows_p):
    flat = a.reshape(-1)
    pad = rows_p * C - flat.shape[0]
    if pad:                                # only for ragged shapes
        flat = jnp.concatenate([flat, jnp.zeros((pad,), flat.dtype)])
    return flat.reshape(rows_p, C)


def _srl32(x, k):
    """Logical right shift on int32 (jnp's >> is arithmetic for signed ints)."""
    return (x >> k) & ((1 << (32 - k)) - 1)


# --------------------------------------------------------------- kernel 1: abs-sum
def _abs_colsum_kernel(x_ref, acc_ref):
    @pl.when(pl.program_id(1) == 0)
    def _init():
        acc_ref[...] = jnp.zeros_like(acc_ref)

    x = jnp.abs(x_ref[...].astype(jnp.float32))
    t, c = x.shape
    # Partial sums into a resident (8, C) accumulator: full-vreg VALU adds, no
    # per-tile cross-sublane reduce and no (1, C) masked read-modify-write.
    acc_ref[...] += x.reshape(t // 8, 8, c).sum(axis=0)


def _abs_sum_per_head(a, max_tile_rows=None):
    """sum(|a|, dims (0,1,2)) -> (H,) via a lane-dense streaming reduction."""
    H = a.shape[-1]
    C, rows, rows_p, tile = _plan(a, max_tile_rows)
    a2 = _to_2d(a, C, rows_p)

    steps = rows_p // tile
    split = 2 if (steps >= 2 and steps % 2 == 0) else 1   # 2 partials -> v7x megacore
    steps_per = steps // split

    acc = pl.pallas_call(
        _abs_colsum_kernel,
        out_shape=jax.ShapeDtypeStruct((split, 8, C), jnp.float32),
        grid=(split, steps_per),
        in_specs=[pl.BlockSpec((tile, C), lambda s, i: (s * steps_per + i, 0))],
        out_specs=pl.BlockSpec((None, 8, C), lambda s, i: (s, 0, 0)),
        compiler_params=pltpu.CompilerParams(
            dimension_semantics=("parallel", "arbitrary")),
    )(a2)

    # Lane l of the flat view holds head (l % H): fold partials + lanes onto heads.
    return acc.sum(axis=(0, 1)).reshape(C // H, H).sum(axis=0)


# ---------------------------------------------------- kernel 2: straight-through noise
_C0, _C1, _C2, _C3, _C4, _C5 = (-7.784894002430293e-03, -3.223964580411365e-01,
                                -2.400758277161838e+00, -2.549732539343734e+00,
                                4.374664141464968e+00, 2.938163982698783e+00)
_D0, _D1, _D2, _D3 = (7.784695709041462e-03, 3.224671290700398e-01,
                      2.445134137142996e+00, 3.754408661907416e+00)
_PLOW = 0.02425
# lowbias32 hash constants as int32 (two's complement of 0x9E3779B9 / 0x846CA68B).
_GOLD = -1640531527
_M1 = 0x7FEB352D
_M2 = -2073254261


def _sta_noise_kernel(seed_ref, gate_ref, a_ref, out_ref):
    tile, C = a_ref.shape
    pid = pl.program_id(0)                 # top level only (interpret-mode safe)

    # Counter-based PRNG: lowbias32 hash of the global element index (plain int32
    # ops only) -> samples are independent of the tiling / grid split.
    ri = jax.lax.broadcasted_iota(jnp.int32, (tile, C), 0) + pid * tile
    ci = jax.lax.broadcasted_iota(jnp.int32, (tile, C), 1)
    x = ri * C + ci
    x = x ^ (seed_ref[0] * _GOLD)
    x = (x ^ _srl32(x, 16)) * _M1
    x = (x ^ _srl32(x, 15)) * _M2
    x = x ^ _srl32(x, 16)

    # 23-bit uniform in [2^-24, 1 - 2^-24]: never exactly 0 or 1 -> log stays finite.
    u = (_srl32(x, 9).astype(jnp.float32) + 0.5) * (2.0 ** -23)

    # Only the upper tail (u > Phi(3) ~ 0.99865) survives relu(z - 3): evaluate just
    # the upper-tail branch of Acklam's inverse normal CDF.
    q = jnp.sqrt(-2.0 * jnp.log(1.0 - u))
    z = -((((((_C0 * q + _C1) * q + _C2) * q + _C3) * q + _C4) * q + _C5) /
          ((((_D0 * q + _D1) * q + _D2) * q + _D3) * q + 1.0))
    z = jnp.where(u > 1.0 - _PLOW, z, 0.0)

    y = jnp.maximum(z - 3.0, 0.0) * gate_ref[...]          # (tile, C) * (1, C)
    out_ref[...] = (a_ref[...].astype(jnp.float32) + y).astype(out_ref.dtype)


def _apply_sta_noise(a, gate, seed, max_tile_rows=None):
    """out = a + relu(N(0,1) - 3) * gate[head]   (gate shared across the batch)."""
    H = a.shape[-1]
    C, rows, rows_p, tile = _plan(a, max_tile_rows)
    a2 = _to_2d(a, C, rows_p)
    gate_row = jnp.tile(gate.astype(jnp.float32), C // H).reshape(1, C)
    seed = seed.astype(jnp.int32).reshape(1)

    out2 = pl.pallas_call(
        _sta_noise_kernel,
        out_shape=jax.ShapeDtypeStruct((rows_p, C), a.dtype),
        grid=(rows_p // tile,),
        in_specs=[
            pl.BlockSpec(memory_space=pltpu.MemorySpace.SMEM),   # seed (1,) int32
            pl.BlockSpec((1, C), lambda i: (0, 0)),              # gate row (resident)
            pl.BlockSpec((tile, C), lambda i: (i, 0)),           # a tile
        ],
        out_specs=pl.BlockSpec((tile, C), lambda i: (i, 0)),
        compiler_params=pltpu.CompilerParams(dimension_semantics=("parallel",)),
    )(seed, gate_row, a2)

    if rows_p * C == a.size:
        return out2.reshape(a.shape)
    return out2.reshape(-1)[:a.size].reshape(a.shape)


# ------------------------------------------------------------------------- forward
def straight_through_attention(a, key):
    """Forward pass of StraightThroughAttention.  Returns (out, new_activ, gate)."""
    B = a.shape[0]
    H = a.shape[-1]

    # `self.activ.shape != a.shape[-1]` (Size vs int) is always True -> activ is
    # re-zeroed each call, so the EMA reduces to 0.03 * sum(|a|, (0,1,2)).
    activ = 0.03 * _abs_sum_per_head(a)            # Pallas reduction kernel

    # STAFunction multinomial head gating (tiny batch-coupled scalar work, plain JAX).
    k_draw, k_seed = jax.random.split(key)
    neg = -5.0 * activ                              # log of per-head weights
    logits = jnp.concatenate([neg, (jax.nn.logsumexp(neg) + jnp.log(99.0 * B))[None]])
    draws = jax.random.categorical(k_draw, logits, shape=(B,))
    hits = jnp.sum(jax.nn.one_hot(draws, H + 1, dtype=jnp.float32), axis=0)[:H]
    gate = 3.0 * (hits > 0).astype(jnp.float32)     # g[:, r] = 3 union; last col dropped
    fire = jnp.any(gate > 0)
    # TODO(synk): torch prints '!!firing random attention!!' when a head fires; host
    # printing on a traced predicate is intentionally omitted.

    seed = jax.random.randint(k_seed, (1,), 0, 2 ** 30, dtype=jnp.int32)

    # Common case (P(fire) ~ 1/99): skip the noise kernel entirely -> out == a with
    # 1x|a| HBM traffic instead of a full read+write through kernel 2.
    out = jax.lax.cond(fire,
                       lambda x: _apply_sta_noise(x, gate, seed),
                       lambda x: x,
                       a)
    return out, activ, gate


# --------------------------------------------------------------------------- main
if __name__ == "__main__":
    # `a` is an attention map: (batch, ntok, ntok, nheads)
    B, T, H = 2, 8, 8
    key = jax.random.PRNGKey(0)
    k_a, k_fwd, k_force = jax.random.split(key, 3)
    a = jax.random.normal(k_a, (B, T, T, H), jnp.float32)

    out, activ, gate = straight_through_attention(a, k_fwd)
    out = jax.block_until_ready(out)
    activ = jax.block_until_ready(activ)

    # ---- checks against a pure-JAX reference --------------------------------
    ref_activ = 0.03 * jnp.sum(jnp.abs(a), axis=(0, 1, 2))
    assert jnp.allclose(activ, ref_activ, rtol=1e-4, atol=1e-4), "activ mismatch"

    diff = out - a
    gate_b = jnp.broadcast_to(gate, out.shape)
    assert bool(jnp.all(diff >= -1e-6)), "noise must be non-negative"
    assert bool(jnp.all(jnp.where(gate_b == 0.0, jnp.abs(diff), 0.0) <= 1e-6)), \
        "noise leaked into non-fired heads"

    # ---- larger input: exercises multi-tile grids + the forced fire path ----
    B2, T2 = 4, 64
    a2 = jax.random.normal(k_force, (B2, T2, T2, H), jnp.float32)

    s2 = jax.block_until_ready(_abs_sum_per_head(a2, max_tile_rows=256))
    assert jnp.allclose(s2, jnp.sum(jnp.abs(a2), axis=(0, 1, 2)),
                        rtol=1e-4, atol=1e-3), "multi-tile abs-sum mismatch"

    gate_f = jnp.full((H,), 3.0, jnp.float32)
    seed_f = jnp.array([1234], jnp.int32)
    out_f = jax.block_until_ready(
        _apply_sta_noise(a2, gate_f, seed_f, max_tile_rows=256))
    nz = out_f - a2
    assert bool(jnp.all(jnp.isfinite(nz))), "noise must be finite"
    assert bool(jnp.all(nz >= -1e-6)), "noise must be non-negative"
    n_pos = int(jnp.sum(nz > 1e-6))
    # relu(N(0,1)-3) fires on ~0.135% of the 131072 elements (~177 expected).
    assert 30 <= n_pos <= 700, f"tail-noise count {n_pos} implausible"
    assert float(jnp.max(nz)) < 30.0, "noise magnitude implausible"

    print("KERNEL_OK")
</pallas_src>

<mosaic_0001>
module attributes {stable_mosaic.version = 11 : i64} {
  func.func @_abs_colsum_kernel(%arg0: i32, %arg1: i32, %arg2: memref<8x128xf32, #tpu.memory_space<vmem>>, %arg3: memref<1x8x128xf32, #tpu.memory_space<vmem>>) attributes {dimension_semantics = [#tpu.dimension_semantics<parallel>, #tpu.dimension_semantics<arbitrary>], iteration_bounds = array<i64: 1, 1>, scalar_prefetch = 0 : i64, scratch_operands = 0 : i64, tpu.core_type = #tpu.core_type<tc>, window_params = [{transform_indices = @transform_0, window_bounds = array<i64: 8, 128>}, {transform_indices = @transform_1, window_bounds = array<i64: 1, 8, 128>}]} {
    %c0_i32 = arith.constant 0 : i32
    %0 = arith.cmpi eq, %arg1, %c0_i32 : i32
    %1 = arith.extui %0 : i1 to i32
    %c0_i32_0 = arith.constant 0 : i32
    %2 = arith.cmpi ne, %1, %c0_i32_0 : i32
    scf.if %2 {
      %cst_8 = arith.constant 0.000000e+00 : f32
      %13 = vector.broadcast %cst_8 : f32 to vector<8x128xf32>
      %c0_9 = arith.constant 0 : index
      %c0_10 = arith.constant 0 : index
      %c0_11 = arith.constant 0 : index
      %14 = vector.load %arg3[%c0_9, %c0_10, %c0_11] : memref<1x8x128xf32, #tpu.memory_space<vmem>>, vector<1x8x128xf32>
      %15 = vector.shape_cast %14 : vector<1x8x128xf32> to vector<8x128xf32>
      %16 = vector.shape_cast %13 : vector<8x128xf32> to vector<1x8x128xf32>
      tpu.vector_store %arg3[%c0_9, %c0_10, %c0_11], %16 {strides = array<i32>} : memref<1x8x128xf32, #tpu.memory_space<vmem>>, vector<1x8x128xf32>,
    } else {
    }
    %c0 = arith.constant 0 : index
    %c0_1 = arith.constant 0 : index
    %3 = vector.load %arg2[%c0, %c0_1] : memref<8x128xf32, #tpu.memory_space<vmem>>, vector<8x128xf32>
    %4 = math.absf %3 : vector<8x128xf32>
    %c0_2 = arith.constant 0 : index
    %c0_3 = arith.constant 0 : index
    %c0_4 = arith.constant 0 : index
    %5 = vector.load %arg3[%c0_2, %c0_3, %c0_4] : memref<1x8x128xf32, #tpu.memory_space<vmem>>, vector<1x8x128xf32>
    %6 = vector.shape_cast %5 : vector<1x8x128xf32> to vector<8x128xf32>
    %7 = vector.shape_cast %4 : vector<8x128xf32> to vector<1x8x128xf32>
    %cst = arith.constant dense<0.000000e+00> : vector<8x128xf32>
    %8 = vector.multi_reduction <add>, %7, %cst [0] : vector<1x8x128xf32> to vector<8x128xf32>
    %9 = arith.addf %6, %8 : vector<8x128xf32>
    %c0_5 = arith.constant 0 : index
    %c0_6 = arith.constant 0 : index
    %c0_7 = arith.constant 0 : index
    %10 = vector.load %arg3[%c0_5, %c0_6, %c0_7] : memref<1x8x128xf32, #tpu.memory_space<vmem>>, vector<1x8x128xf32>
    %11 = vector.shape_cast %10 : vector<1x8x128xf32> to vector<8x128xf32>
    %12 = vector.shape_cast %9 : vector<8x128xf32> to vector<1x8x128xf32>
    tpu.vector_store %arg3[%c0_5, %c0_6, %c0_7], %12 {strides = array<i32>} : memref<1x8x128xf32, #tpu.memory_space<vmem>>, vector<1x8x128xf32>,
    return
  }
  func.func @transform_0(%arg0: i32, %arg1: i32) -> (i32, i32) {
    %c1_i32 = arith.constant 1 : i32
    %0 = arith.muli %arg0, %c1_i32 : i32
    %1 = arith.addi %0, %arg1 : i32
    %c0_i32 = arith.constant 0 : i32
    %c0_i32_0 = arith.constant 0 : i32
    return %1, %c0_i32 : i32, i32
  }
  func.func @transform_1(%arg0: i32, %arg1: i32) -> (i32, i32, i32) {
    %c0_i32 = arith.constant 0 : i32
    %c0_i32_0 = arith.constant 0 : i32
    %c0_i32_1 = arith.constant 0 : i32
    return %arg0, %c0_i32, %c0_i32_0 : i32, i32, i32
  }
}

</mosaic_0001>

<llo_original>
// kernel: tpu_custom_call.1
$region0: #{tpu_custom_call.1}
  #allocation0 [shape = 'u32[]', space=smem, size = 0x4, offset = 0x4, fixed_abs, tag = 'smem constant byte address 0x4 - core index']
  #allocation1 [shape = 'u32[144,128]{1,0:T(1,128)}', space=vmem, size = 0x12000, scoped, tag = 'internal scratch']
  %s0 = inlined_call_operand.hbm [shape: f32[8,128], index: 0, kind: input, shape index: {}]
  %s1 = inlined_call_operand.hbm [shape: f32[1,8,128], index: 1, kind: output, shape index: {}]
  %s2 = sld [smem:[#allocation0]]
  $region22: #{tpu_custom_call.1} parent=0
    _
  %s4 = ssub.s32 1, %s2
  %s5 = scalar_select 0, %s4, %s2
  $region1: #{tpu_custom_call.1} parent=0
    #allocation2 [shape = 'u8[4096]{0}', space=vmem, size = 0x1000, scoped, tag = 'input window, operand 0, single buffered']
    #allocation3 [shape = 's32[1]{0}', space=sflag, size = 0x4, scoped, tag = 'scoped memory for tpu_custom_call.1']
    #allocation4 [shape = 's32[1]{0}', space=sflag, size = 0x4, scoped, tag = 'scoped memory for tpu_custom_call.1']
    #allocation5 [shape = 'u8[4096]{0}', space=vmem, size = 0x1000, scoped, tag = 'output window, operand 0, single buffered']
    %6 = vsyncpa [#allocation3], 0
    %7 = vsyncpa [#allocation4], 0
    // Predicated region
    $region2: #{tpu_custom_call.1} parent=1 // pred_check
      _
    $region3: #{tpu_custom_call.1} parent=1 // pred_check_branch
      %9 = sbr.rel (0) target = $region5
    $region4: #{tpu_custom_call.1} parent=1 // pred_region
      %s10 = sadd.s32 0, 0
      %s12 = ssub.s32 128, 128
      %13 = vsyncadd [#allocation3], %s12
      %s14 = smul.addr %s10, 128
      %s15 = scalar_lea.hbm %s0, %s14
      %s17 = sshll.u32 [#allocation2], 4
      %s18 = int_to_ptr.vmem [resolvable:$true] %s17
      %20 = dma.hbm_to_vmem [thread:$0]  %s15, 128, %s18, [#allocation3]
    $region5: #{tpu_custom_call.1} parent=1 // pred_fallthru
      _
    // Predicated region
    $region6: #{tpu_custom_call.1} parent=1 // pred_check
      _
    $region7: #{tpu_custom_call.1} parent=1 // pred_check_branch
      %22 = sbr.rel (0) target = $region9
    $region8: #{tpu_custom_call.1} parent=1 // pred_region
      %23 = dma.done [#allocation3], 128
    $region9: #{tpu_custom_call.1} parent=1 // pred_fallthru
      _
    %s24 = sadd.s32 0, 0
    %p25 = scmp.eq.s32.totalorder 0, 0
    // Predicated region
    $region10: #{tpu_custom_call.1} parent=1 // pred_check
      %p26 = pneg %p25
    $region11: #{tpu_custom_call.1} parent=1 // pred_check_branch
      %28 = sbr.rel (%p26) target = $region13
    $region12: #{tpu_custom_call.1} parent=1 // pred_region
      %29 = vst [vmem:[#allocation5] sm:$0xff] 0.0
    $region13: #{tpu_custom_call.1} parent=1 // pred_fallthru
      _
    %v30 = vld [vmem:[#allocation2] sm:$0xff]
    %v31 = vand.u32 2147483647, %v30
    %v32 = vld [vmem:[#allocation5] sm:$0xff]
    %v33 = vadd.f32 %v31, 0.0
    %v34 = vadd.f32 %v32, %v33
    %35 = vst [vmem:[#allocation5] sm:$0xff] %v34
    // Predicated region
    $region14: #{tpu_custom_call.1} parent=1 // pred_check
      _
    $region15: #{tpu_custom_call.1} parent=1 // pred_check_branch
      %37 = sbr.rel (0) target = $region17
    $region16: #{tpu_custom_call.1} parent=1 // pred_region
      %s39 = ssub.s32 128, 128
      %40 = vsyncadd [#allocation4], %s39
      %s42 = sshll.u32 [#allocation5], 4
      %s43 = int_to_ptr.vmem [resolvable:$true] %s42
      %45 = dma.vmem_to_hbm [thread:$0]  %s43, 128, %s1, [#allocation4]
    $region17: #{tpu_custom_call.1} parent=1 // pred_fallthru
      _
    // Predicated region
    $region18: #{tpu_custom_call.1} parent=1 // pred_check
      _
    $region19: #{tpu_custom_call.1} parent=1 // pred_check_branch
      %47 = sbr.rel (0) target = $region21
    $region20: #{tpu_custom_call.1} parent=1 // pred_region
      %48 = dma.done [#allocation4], 128
    $region21: #{tpu_custom_call.1} parent=1 // pred_fallthru
      _
    %49 = vsyncpa [#allocation3], 1
    %50 = vsyncpa [#allocation4], 1

</llo_original>
